<compile_context>
chip_gen: v7x
topology: tpu7x:2x2x1
jax: 0.10.0
libtpu: 0.0.40
codegen_flags: <defaults>
</compile_context>

<pallas_src>
import jax
import jax.numpy as jnp
from jax.experimental import pallas as pl
from jax.experimental.pallas import tpu as pltpu


def _round_up(x: int, m: int) -> int:
    return ((x + m - 1) // m) * m


def _gated_linear_kernel(a_ref, g_ref, w_ref, b_ref, o_ref, acc_ref):
    """acc[i,j] += (a*g)[i,k] @ w[k,j];  o = acc + bias on the last k step."""
    k = pl.program_id(2)

    @pl.when(k == 0)
    def _init():
        acc_ref[...] = jnp.zeros_like(acc_ref)

    x = a_ref[...] * g_ref[...]                        # fused elementwise gate (VPU)
    acc_ref[...] += jnp.dot(x, w_ref[...],             # MXU, f32 accumulation
                            preferred_element_type=jnp.float32)

    @pl.when(k == pl.num_programs(2) - 1)
    def _finalize():
        o_ref[...] = (acc_ref[...] + b_ref[...]).astype(o_ref.dtype)


def prepare_linear_params(weight, bias, *, compute_dtype=jnp.bfloat16):
    """One-time layout plumbing (do this at init, NOT per forward call).

    weight: [n_classes, in_dim]  (PyTorch nn.Linear convention)
    bias:   [n_classes]
    Returns (w_t [K_pad, N_pad] compute_dtype, bias2d [1, N_pad] f32).
    """
    n_classes, in_dim = weight.shape
    n_pad = _round_up(n_classes, 128)          # lane-dense output tiles
    k_pad = _round_up(in_dim, 128)
    w_t = jnp.zeros((k_pad, n_pad), dtype=compute_dtype)
    w_t = w_t.at[:in_dim, :n_classes].set(weight.T.astype(compute_dtype))
    b2d = jnp.zeros((1, n_pad), dtype=jnp.float32)
    b2d = b2d.at[:, :n_classes].set(bias.astype(jnp.float32))
    return w_t, b2d


def _pick_tiles(b: int, k_pad: int, n_pad: int):
    tb = 128 if b >= 128 else _round_up(b, 8)
    tk = next(c for c in (512, 384, 256, 128) if k_pad % c == 0)
    tn = 256 if (n_pad >= 256 and n_pad % 256 == 0) else 128
    return tb, tk, tn


def bert_pn_forward_linear(inputs, input_b, w_t, bias2d, n_classes):
    """out_from='linear' branch of BertPN.forward: Linear(inputs * input_b)."""
    compute_dtype = w_t.dtype
    B, K = inputs.shape
    K_pad, N_pad = w_t.shape

    tb, tk, tn = _pick_tiles(B, K_pad, N_pad)
    B_pad = _round_up(B, tb)

    a = inputs.astype(compute_dtype)
    g = input_b.astype(compute_dtype)
    if K_pad != K or B_pad != B:
        a = jnp.pad(a, ((0, B_pad - B), (0, K_pad - K)))
        g = jnp.pad(g, ((0, B_pad - B), (0, K_pad - K)))

    grid = (B_pad // tb, N_pad // tn, K_pad // tk)

    cost = pl.CostEstimate(
        flops=2 * B_pad * K_pad * N_pad + B_pad * K_pad,
        transcendentals=0,
        bytes_accessed=(2 * B_pad * K_pad * a.dtype.itemsize
                        + K_pad * N_pad * w_t.dtype.itemsize
                        + N_pad * 4
                        + B_pad * N_pad * 4),
    )

    out_padded = pl.pallas_call(
        _gated_linear_kernel,
        out_shape=jax.ShapeDtypeStruct((B_pad, N_pad), jnp.float32),
        grid_spec=pltpu.PrefetchScalarGridSpec(
            num_scalar_prefetch=0,
            grid=grid,
            in_specs=[
                pl.BlockSpec((tb, tk), lambda i, j, k: (i, k)),   # inputs tile
                pl.BlockSpec((tb, tk), lambda i, j, k: (i, k)),   # gate tile
                pl.BlockSpec((tk, tn), lambda i, j, k: (k, j)),   # weight (pre-transposed)
                pl.BlockSpec((1, tn), lambda i, j, k: (0, j)),    # bias
            ],
            out_specs=pl.BlockSpec((tb, tn), lambda i, j, k: (i, j)),
            scratch_shapes=[pltpu.VMEM((tb, tn), jnp.float32)],
        ),
        compiler_params=pltpu.CompilerParams(
            dimension_semantics=("parallel", "parallel", "arbitrary"),
            vmem_limit_bytes=32 * 1024 * 1024,
        ),
        cost_estimate=cost,
    )(a, g, w_t, bias2d)

    return out_padded[:B, :n_classes]


# n_classes (arg 4) determines the static output slice -> static under jit.
bert_pn_linear = jax.jit(bert_pn_forward_linear, static_argnums=(4,))


if __name__ == "__main__":
    # Small shapes consistent with the module: nn.Linear(768, n_classes).
    batch, in_dim, n_classes = 16, 768, 5

    key = jax.random.PRNGKey(0)
    kx, kg, kw, kb = jax.random.split(key, 4)

    bound = 1.0 / (in_dim ** 0.5)     # nn.Linear default uniform init
    weight = jax.random.uniform(kw, (n_classes, in_dim), jnp.float32, -bound, bound)
    bias = jax.random.uniform(kb, (n_classes,), jnp.float32, -bound, bound)

    inputs = jax.random.normal(kx, (batch, in_dim), jnp.float32)    # pooled BERT features
    input_b = jax.random.normal(kg, (batch, in_dim), jnp.float32)   # ANML gate

    w_t, b2d = prepare_linear_params(weight, bias)                  # once, at init time

    out = bert_pn_linear(inputs, input_b, w_t, b2d, n_classes)
    out = jax.block_until_ready(out)
    assert out.shape == (batch, n_classes)

    # Tight check against a bf16-operand / f32-accumulate reference (what the MXU
    # actually computes), plus a looser check against the exact f32 module semantics.
    a_bf = inputs.astype(jnp.bfloat16)
    g_bf = input_b.astype(jnp.bfloat16)
    x_bf = (a_bf * g_bf).astype(jnp.float32)
    ref_bf16 = x_bf @ weight.T.astype(jnp.bfloat16).astype(jnp.float32) + bias
    ref_f32 = (inputs * input_b) @ weight.T + bias

    assert jnp.allclose(out, ref_bf16, atol=1e-3, rtol=1e-3), \
        float(jnp.max(jnp.abs(out - ref_bf16)))
    assert jnp.allclose(out, ref_f32, atol=5e-2, rtol=5e-2), \
        float(jnp.max(jnp.abs(out - ref_f32)))

    print("KERNEL_OK")
</pallas_src>

<mosaic_0001>
module attributes {stable_mosaic.version = 11 : i64} {
  func.func @_gated_linear_kernel(%arg0: i32, %arg1: i32, %arg2: i32, %arg3: memref<16x384xbf16, #tpu.memory_space<vmem>>, %arg4: memref<16x384xbf16, #tpu.memory_space<vmem>>, %arg5: memref<384x128xbf16, #tpu.memory_space<vmem>>, %arg6: memref<1x128xf32, #tpu.memory_space<vmem>>, %arg7: memref<16x128xf32, #tpu.memory_space<vmem>>, %arg8: memref<16x128xf32, #tpu.memory_space<vmem>>) attributes {dimension_semantics = [#tpu.dimension_semantics<parallel>, #tpu.dimension_semantics<parallel>, #tpu.dimension_semantics<arbitrary>], iteration_bounds = array<i64: 1, 1, 2>, scalar_prefetch = 0 : i64, scratch_operands = 1 : i64, tpu.core_type = #tpu.core_type<tc>, window_params = [{transform_indices = @transform_0, window_bounds = array<i64: 16, 384>}, {transform_indices = @transform_1, window_bounds = array<i64: 16, 384>}, {transform_indices = @transform_2, window_bounds = array<i64: 384, 128>}, {transform_indices = @transform_3, window_bounds = array<i64: 1, 128>}, {transform_indices = @transform_4, window_bounds = array<i64: 16, 128>}]} {
    %c0_i32 = arith.constant 0 : i32
    %0 = arith.cmpi eq, %arg2, %c0_i32 : i32
    %1 = arith.extui %0 : i1 to i32
    %c0_i32_0 = arith.constant 0 : i32
    %2 = arith.cmpi ne, %1, %c0_i32_0 : i32
    scf.if %2 {
      %cst_11 = arith.constant 0.000000e+00 : f32
      %14 = vector.broadcast %cst_11 : f32 to vector<16x128xf32>
      %c0_12 = arith.constant 0 : index
      %c0_13 = arith.constant 0 : index
      %15 = vector.load %arg8[%c0_12, %c0_13] : memref<16x128xf32, #tpu.memory_space<vmem>>, vector<16x128xf32>
      tpu.vector_store %arg8[%c0_12, %c0_13], %14 {strides = array<i32>} : memref<16x128xf32, #tpu.memory_space<vmem>>, vector<16x128xf32>,
    } else {
    }
    %c0 = arith.constant 0 : index
    %c0_1 = arith.constant 0 : index
    %3 = vector.load %arg3[%c0, %c0_1] : memref<16x384xbf16, #tpu.memory_space<vmem>>, vector<16x384xbf16>
    %c0_2 = arith.constant 0 : index
    %c0_3 = arith.constant 0 : index
    %4 = vector.load %arg4[%c0_2, %c0_3] : memref<16x384xbf16, #tpu.memory_space<vmem>>, vector<16x384xbf16>
    %5 = arith.mulf %3, %4 : vector<16x384xbf16>
    %c0_4 = arith.constant 0 : index
    %c0_5 = arith.constant 0 : index
    %6 = vector.load %arg8[%c0_4, %c0_5] : memref<16x128xf32, #tpu.memory_space<vmem>>, vector<16x128xf32>
    %c0_6 = arith.constant 0 : index
    %c0_7 = arith.constant 0 : index
    %7 = vector.load %arg5[%c0_6, %c0_7] : memref<384x128xbf16, #tpu.memory_space<vmem>>, vector<384x128xbf16>
    %cst = arith.constant dense<0.000000e+00> : vector<16x128xf32>
    %8 = tpu.matmul %5, %7, %cst {dimension_numbers = #tpu.dot_dimension_numbers<[1], [0], [0], [1], [0, 0, 1, 1], [], []>} : vector<16x384xbf16>, vector<384x128xbf16>, vector<16x128xf32> -> vector<16x128xf32>
    %9 = arith.addf %6, %8 : vector<16x128xf32>
    %c0_8 = arith.constant 0 : index
    %c0_9 = arith.constant 0 : index
    %10 = vector.load %arg8[%c0_8, %c0_9] : memref<16x128xf32, #tpu.memory_space<vmem>>, vector<16x128xf32>
    tpu.vector_store %arg8[%c0_8, %c0_9], %9 {strides = array<i32>} : memref<16x128xf32, #tpu.memory_space<vmem>>, vector<16x128xf32>,
    %c1_i32 = arith.constant 1 : i32
    %11 = arith.cmpi eq, %arg2, %c1_i32 : i32
    %12 = arith.extui %11 : i1 to i32
    %c0_i32_10 = arith.constant 0 : i32
    %13 = arith.cmpi ne, %12, %c0_i32_10 : i32
    scf.if %13 {
      %c0_11 = arith.constant 0 : index
      %c0_12 = arith.constant 0 : index
      %14 = vector.load %arg8[%c0_11, %c0_12] : memref<16x128xf32, #tpu.memory_space<vmem>>, vector<16x128xf32>
      %c0_13 = arith.constant 0 : index
      %c0_14 = arith.constant 0 : index
      %15 = vector.load %arg6[%c0_13, %c0_14] : memref<1x128xf32, #tpu.memory_space<vmem>>, vector<1x128xf32>
      %16 = vector.broadcast %15 : vector<1x128xf32> to vector<16x128xf32>
      %17 = arith.addf %14, %16 : vector<16x128xf32>
      %c0_15 = arith.constant 0 : index
      %c0_16 = arith.constant 0 : index
      %18 = vector.load %arg7[%c0_15, %c0_16] : memref<16x128xf32, #tpu.memory_space<vmem>>, vector<16x128xf32>
      tpu.vector_store %arg7[%c0_15, %c0_16], %17 {strides = array<i32>} : memref<16x128xf32, #tpu.memory_space<vmem>>, vector<16x128xf32>,
    } else {
    }
    return
  }
  func.func @transform_0(%arg0: i32, %arg1: i32, %arg2: i32) -> (i32, i32) {
    %c0_i32 = arith.constant 0 : i32
    return %arg0, %arg2 : i32, i32
  }
  func.func @transform_1(%arg0: i32, %arg1: i32, %arg2: i32) -> (i32, i32) {
    %c0_i32 = arith.constant 0 : i32
    return %arg0, %arg2 : i32, i32
  }
  func.func @transform_2(%arg0: i32, %arg1: i32, %arg2: i32) -> (i32, i32) {
    %c0_i32 = arith.constant 0 : i32
    return %arg2, %arg1 : i32, i32
  }
  func.func @transform_3(%arg0: i32, %arg1: i32, %arg2: i32) -> (i32, i32) {
    %c0_i32 = arith.constant 0 : i32
    %c0_i32_0 = arith.constant 0 : i32
    return %c0_i32, %arg1 : i32, i32
  }
  func.func @transform_4(%arg0: i32, %arg1: i32, %arg2: i32) -> (i32, i32) {
    %c0_i32 = arith.constant 0 : i32
    return %arg0, %arg1 : i32, i32
  }
}

</mosaic_0001>

<llo_original>
// kernel: bert_pn_forward_linear.1
$region0: #{bert_pn_forward_linear.1}
  #allocation0 [shape = 'u32[]', space=smem, size = 0x4, offset = 0x4, fixed_abs, tag = 'smem constant byte address 0x4 - core index']
  #allocation1 [shape = 'u32[144,128]{1,0:T(1,128)}', space=vmem, size = 0x12000, scoped, tag = 'internal scratch']
  #allocation2 [shape = 'f32[16,128]{1,0:T(8,128)}', space=vmem, size = 0x2000, scoped, tag = 'scratch operand']
  %s0 = inlined_call_operand.vmem [shape: bf16[16,768], index: 0, kind: input, shape index: {}]
  %s1 = inlined_call_operand.vmem [shape: bf16[16,768], index: 1, kind: input, shape index: {}]
  %s2 = inlined_call_operand.hbm [shape: bf16[768,128], index: 2, kind: input, shape index: {}]
  %s3 = inlined_call_operand.vmem [shape: f32[1,128], index: 3, kind: input, shape index: {}]
  %s4 = inlined_call_operand.vmem [shape: f32[16,128], index: 4, kind: output, shape index: {}]
  %s5 = sld [smem:[#allocation0]]
  $region113: #{bert_pn_forward_linear.1} parent=0
    _
  %s7 = ssub.s32 1, %s5
  %s8 = scalar_select 0, %s7, %s5
  $region1: #{bert_pn_forward_linear.1} parent=0
    #allocation3 [shape = 'u8[24576]{0}', space=vmem, size = 0x6000, scoped, tag = 'input window, operand 0']
    #allocation4 [shape = 'u8[24576]{0}', space=vmem, size = 0x6000, scoped, tag = 'input window, operand 1']
    #allocation5 [shape = 'u8[196608]{0}', space=vmem, size = 0x30000, scoped, tag = 'input window, operand 2']
    #allocation6 [shape = 's32[2]{0}', space=sflag, size = 0x8, scoped, tag = 'scoped memory for bert_pn_forward_linear.1']
    %9 = vsyncpa [#allocation6], 0
    %s10 = scalar_lea.sflag [#allocation6], 1
    %11 = vsyncpa %s10, 0
    loop: start=0, step=1, limit=4
    $region2: #{bert_pn_forward_linear.1} parent=1 // loop_pre_header
      _
    $region3: #{bert_pn_forward_linear.1} parent=1 // loop_header
      %s13 = sphi 0, %s17
      %p14 = scmp.ge.s32.totalorder %s13, 4
      %s20 = sphi 0, %s39
      %s21 = sphi 0, %s35
      %s22 = sphi 0, %s31
      %s23 = sphi 0, %s20
      %s24 = sphi 0, %s21
      %s25 = sphi 0, %s22
      %s26 = sphi 0, %s23
      %s27 = sphi 0, %s24
      %s28 = sphi 0, %s25
      %s44 = sphi 0, %s46
      %s47 = sphi 0, %s44
      %s48 = sphi 0, %s47
      %s64 = sphi 0, %s48
      %s72 = sphi 0, %s74
      %s75 = sphi 0, %s72
      %s76 = sphi 0, %s75
      %s92 = sphi 0, %s76
      %s100 = sphi 0, %s102
      %s103 = sphi 0, %s100
      %s104 = sphi 0, %s103
      %s120 = sphi 0, %s104
      %s126 = sphi 0, %s128
      %s129 = sphi 0, %s126
      %s130 = sphi 0, %s129
      %s146 = sphi 0, %s130
      %s154 = sphi 0, %s156
      %s157 = sphi 0, %s154
      %s158 = sphi 0, %s157
      %s174 = sphi 0, %s158
    $region4: #{bert_pn_forward_linear.1} parent=1 // loop_header_branch
      %16 = sbr.rel (%p14) target = $region8
    $region5: #{bert_pn_forward_linear.1} parent=1 // loop_body
      %s18 = ssub.s32 %s13, 1
      %s19 = ssub.s32 %s13, 2
      %s29 = sadd.s32 1, %s22
      %p30 = scmp.ge.s32.totalorder %s29, 2
      %s31 = scalar_select %p30, 0, %s29
      %s32 = sadd.s32 1, %s21
      %s33 = scalar_select %p30, %s32, %s21
      %p34 = scmp.ge.s32.totalorder %s33, 1
      %s35 = scalar_select %p34, 0, %s33
      %s36 = sadd.s32 1, %s20
      %s37 = scalar_select %p34, %s36, %s20
      %p38 = scmp.ge.s32.totalorder %s37, 1
      %s39 = scalar_select %p38, 0, %s37
      %s40 = ssub.s32 %s20, %s39
      %s41 = ssub.s32 %s22, %s31
      %s42 = sor.u32 %s40, %s41
      %p43 = scmp.eq.s32.totalorder %s42, 0
      %s45 = sadd.s32 %s44, 1
      %s46 = scalar_select %p43, %s44, %s45
      %p49 = pneg %p43
      %p50 = scmp.eq.s32.totalorder %s13, 1
      %p51 = por %p49, %p50
      %p52 = scmp.ne.s32.totalorder %s44, %s47
      %p53 = scmp.eq.s32.totalorder %s13, 0
      %p54 = por %p52, %p53
      %p55 = scmp.ne.s32.totalorder %s44, %s47
      %p56 = scmp.eq.s32.totalorder %s18, 1
      %p57 = por %p55, %p56
      %p58 = scmp.ne.s32.totalorder %s47, %s48
      %p59 = scmp.eq.s32.totalorder %s18, 0
      %p60 = por %p58, %p59
      %p61 = scmp.ne.s32.totalorder %s47, %s48
      %p62 = scmp.eq.s32.totalorder %s19, 1
      %p63 = por %p61, %p62
      %p65 = scmp.ne.s32.totalorder %s48, %s64
      %p66 = scmp.eq.s32.totalorder %s19, 0
      %p67 = por %p65, %p66
      %s68 = ssub.s32 %s20, %s39
      %s69 = ssub.s32 %s22, %s31
      %s70 = sor.u32 %s68, %s69
      %p71 = scmp.eq.s32.totalorder %s70, 0
      %s73 = sadd.s32 %s72, 1
      %s74 = scalar_select %p71, %s72, %s73
      %p77 = pneg %p71
      %p78 = scmp.eq.s32.totalorder %s13, 1
      %p79 = por %p77, %p78
      %p80 = scmp.ne.s32.totalorder %s72, %s75
      %p81 = scmp.eq.s32.totalorder %s13, 0
      %p82 = por %p80, %p81
      %p83 = scmp.ne.s32.totalorder %s72, %s75
      %p84 = scmp.eq.s32.totalorder %s18, 1
      %p85 = por %p83, %p84
      %p86 = scmp.ne.s32.totalorder %s75, %s76
      %p87 = scmp.eq.s32.totalorder %s18, 0
      %p88 = por %p86, %p87
      %p89 = scmp.ne.s32.totalorder %s75, %s76
      %p90 = scmp.eq.s32.totalorder %s19, 1
      %p91 = por %p89, %p90
      %p93 = scmp.ne.s32.totalorder %s76, %s92
      %p94 = scmp.eq.s32.totalorder %s19, 0
      %p95 = por %p93, %p94
      %s96 = ssub.s32 %s22, %s31
      %s97 = ssub.s32 %s21, %s35
      %s98 = sor.u32 %s96, %s97
      %p99 = scmp.eq.s32.totalorder %s98, 0
      %s101 = sadd.s32 %s100, 1
      %s102 = scalar_select %p99, %s100, %s101
      %p105 = pneg %p99
      %p106 = scmp.eq.s32.totalorder %s13, 1
      %p107 = por %p105, %p106
      %p108 = scmp.ne.s32.totalorder %s100, %s103
      %p109 = scmp.eq.s32.totalorder %s13, 0
      %p110 = por %p108, %p109
      %p111 = scmp.ne.s32.totalorder %s100, %s103
      %p112 = scmp.eq.s32.totalorder %s18, 1
      %p113 = por %p111, %p112
      %p114 = scmp.ne.s32.totalorder %s103, %s104
      %p115 = scmp.eq.s32.totalorder %s18, 0
      %p116 = por %p114, %p115
      %p117 = scmp.ne.s32.totalorder %s103, %s104
      %p118 = scmp.eq.s32.totalorder %s19, 1
      %p119 = por %p117, %p118
      %p121 = scmp.ne.s32.totalorder %s104, %s120
      %p122 = scmp.eq.s32.totalorder %s19, 0
      %p123 = por %p121, %p122
      %s124 = ssub.s32 %s21, %s35
      %p125 = scmp.eq.s32.totalorder %s124, 0
      %s127 = sadd.s32 %s126, 1
      %s128 = scalar_select %p125, %s126, %s127
      %p131 = pneg %p125
      %p132 = scmp.eq.s32.totalorder %s13, 1
      %p133 = por %p131, %p132
      %p134 = scmp.ne.s32.totalorder %s126, %s129
      %p135 = scmp.eq.s32.totalorder %s13, 0
      %p136 = por %p134, %p135
      %p137 = scmp.ne.s32.totalorder %s126, %s129
      %p138 = scmp.eq.s32.totalorder %s18, 1
      %p139 = por %p137, %p138
      %p140 = scmp.ne.s32.totalorder %s129, %s130
      %p141 = scmp.eq.s32.totalorder %s18, 0
      %p142 = por %p140, %p141
      %p143 = scmp.ne.s32.totalorder %s129, %s130
      %p144 = scmp.eq.s32.totalorder %s19, 1
      %p145 = por %p143, %p144
      %p147 = scmp.ne.s32.totalorder %s130, %s146
      %p148 = scmp.eq.s32.totalorder %s19, 0
      %p149 = por %p147, %p148
      %s150 = ssub.s32 %s20, %s39
      %s151 = ssub.s32 %s21, %s35
      %s152 = sor.u32 %s150, %s151
      %p153 = scmp.eq.s32.totalorder %s152, 0
      %s155 = sadd.s32 %s154, 1
      %s156 = scalar_select %p153, %s154, %s155
      %p159 = pneg %p153
      %p160 = scmp.eq.s32.totalorder %s13, 1
      %p161 = por %p159, %p160
      %p162 = scmp.ne.s32.totalorder %s154, %s157
      %p163 = scmp.eq.s32.totalorder %s13, 0
      %p164 = por %p162, %p163
      %p165 = scmp.ne.s32.totalorder %s154, %s157
      %p166 = scmp.eq.s32.totalorder %s18, 1
      %p167 = por %p165, %p166
      %p168 = scmp.ne.s32.totalorder %s157, %s158
      %p169 = scmp.eq.s32.totalorder %s18, 0
      %p170 = por %p168, %p169
      %p171 = scmp.ne.s32.totalorder %s157, %s158
      %p172 = scmp.eq.s32.totalorder %s19, 1
      %p173 = por %p171, %p172
      %p175 = scmp.ne.s32.totalorder %s158, %s174
      %p176 = scmp.eq.s32.totalorder %s19, 0
      %p177 = por %p175, %p176
      %p178 = scmp.le.s32.totalorder 1, %s13
      %p179 = scmp.lt.s32.totalorder %s13, 3
      %p180 = pnand %p178, %p179
      %p181 = pneg %p180
      // Predicated region
      $region9: #{bert_pn_forward_linear.1} parent=5 // pred_check
        _
      $region10: #{bert_pn_forward_linear.1} parent=5 // pred_check_branch
        %183 = sbr.rel (%p180) target = $region12
      $region11: #{bert_pn_forward_linear.1} parent=5 // pred_region
        %s184 = ssub.s32 %s13, 1
        // Predicated region
        $region13: #{bert_pn_forward_linear.1} parent=11 // pred_check
          %p185 = pneg %p142
        $region14: #{bert_pn_forward_linear.1} parent=11 // pred_check_branch
          %187 = sbr.rel (%p185) target = $region16
        $region15: #{bert_pn_forward_linear.1} parent=11 // pred_region
          %p188 = scmp.lt.s32.totalorder %s24, 0
          %s189 = scalar_select %p188, %s24, 0
          %s190 = scalar_lea.vmem %s3, %s189
        $region16: #{bert_pn_forward_linear.1} parent=11 // pred_fallthru
          _
      $region12: #{bert_pn_forward_linear.1} parent=5 // pred_fallthru
        _
      %p191 = scmp.lt.s32.totalorder %s13, 2
      // Predicated region
      $region17: #{bert_pn_forward_linear.1} parent=5 // pred_check
        %p192 = pneg %p191
      $region18: #{bert_pn_forward_linear.1} parent=5 // pred_check_branch
        %194 = sbr.rel (%p192) target = $region20
      $region19: #{bert_pn_forward_linear.1} parent=5 // pred_region
        // Predicated region
        $region21: #{bert_pn_forward_linear.1} parent=19 // pred_check
          %p195 = pneg %p54
        $region22: #{bert_pn_forward_linear.1} parent=19 // pred_check_branch
          %197 = sbr.rel (%p195) target = $region24
        $region23: #{bert_pn_forward_linear.1} parent=19 // pred_region
          %s198 = sand.u32 %s44, 1
          %s199 = sand.u32 %s44, 1
          %s200 = smul.addr %s199, 24
          %s201 = scalar_lea.vmem [#allocation3], %s200
          %s202 = smul.u32 2, %s20
          %s203 = smul.u32 3, %s22
          %s204 = smul.addr %s202, 6
          %s205 = sadd.s32 %s203, %s204
          %s206 = smul.addr %s205, 4
          %s207 = scalar_lea.vmem %s0, %s206
          // Predicated region
          $region25: #{bert_pn_forward_linear.1} parent=23 // pred_check
            _
          $region26: #{bert_pn_forward_linear.1} parent=23 // pred_check_branch
            %209 = sbr.rel (0) target = $region28
          $region27: #{bert_pn_forward_linear.1} parent=23 // pred_region
            // Predicated region
            $region29: #{bert_pn_forward_linear.1} parent=27 // pred_check
              _
            $region30: #{bert_pn_forward_linear.1} parent=27 // pred_check_branch
              %211 = sbr.rel (0) target = $region32
            $region31: #{bert_pn_forward_linear.1} parent=27 // pred_region
              %s212 = scalar_lea.vmem %s207, 8
              %s213 = scalar_lea.vmem %s201, 8 [#allocation3]
              loop: start=0, step=1, limit=1
              $region33: #{bert_pn_forward_linear.1} parent=31 // loop_pre_header
                _
              $region34: #{bert_pn_forward_linear.1} parent=31 // loop_header
                %s215 = sphi 0, %s219
                %p216 = scmp.ge.s32.totalorder %s215, 1
                %s220 = sphi %s207, %s207
                %s221 = sphi %s201, %s201
              $region35: #{bert_pn_forward_linear.1} parent=31 // loop_header_branch
                %218 = sbr.rel (%p216) target = $region39
              $region36: #{bert_pn_forward_linear.1} parent=31 // loop_body
                %v222 = vld [vmem:[%s220] sm:$0xff]
                %223 = vst [vmem:[%s221] sm:$0xff] %v222
                %v224 = vld [vmem:[%s220 + $0x18] sm:$0xff]
                %225 = vst [vmem:[%s221 + $0xc] sm:$0xff] %v224
              $region37: #{bert_pn_forward_linear.1} parent=31 // loop_footer
                %s219 = sadd.s32 1, %s215
              $region38: #{bert_pn_forward_linear.1} parent=31 // loop_footer_branch
                %214 = sbr.rel target = $region34
              $region39: #{bert_pn_forward_linear.1} parent=31 // loop_exit
                _
              loop: start=0, step=1, limit=1
              $region40: #{bert_pn_forward_linear.1} parent=31 // loop_pre_header
                _
              $region41: #{bert_pn_forward_linear.1} parent=31 // loop_header
                %s228 = sphi 0, %s232
                %p229 = scmp.ge.s32.totalorder %s228, 1
                %s233 = sphi %s212, %s212
                %s234 = sphi %s213, %s213
              $region42: #{bert_pn_forward_linear.1} parent=31 // loop_header_branch
                %231 = sbr.rel (%p229) target = $region46
              $region43: #{bert_pn_forward_linear.1} parent=31 // loop_body
                %v235 = vld [vmem:[%s233] sm:$0xf]
                %236 = vst [vmem:[%s234] sm:$0xf] %v235
                %v237 = vld [vmem:[%s233 + $0x18] sm:$0xf]
                %238 = vst [vmem:[%s234 + $0xc] sm:$0xf] %v237
              $region44: #{bert_pn_forward_linear.1} parent=31 // loop_footer
                %s232 = sadd.s32 1, %s228
              $region45: #{bert_pn_forward_linear.1} parent=31 // loop_footer_branch
                %227 = sbr.rel target = $region41
              $region46: #{bert_pn_forward_linear.1} parent=31 // loop_exit
                _
            $region32: #{bert_pn_forward_linear.1} parent=27 // pred_fallthru
              _
          $region28: #{bert_pn_forward_linear.1} parent=23 // pred_fallthru
            _
          %239 = vnop
        $region24: #{bert_pn_forward_linear.1} parent=19 // pred_fallthru
          _
        // Predicated region
        $region47: #{bert_pn_forward_linear.1} parent=19 // pred_check
          %p240 = pneg %p82
        $region48: #{bert_pn_forward_linear.1} parent=19 // pred_check_branch
          %242 = sbr.rel (%p240) target = $region50
        $region49: #{bert_pn_forward_linear.1} parent=19 // pred_region
          %s243 = sand.u32 %s72, 1
          %s244 = sand.u32 %s72, 1
          %s245 = smul.addr %s244, 24
          %s246 = scalar_lea.vmem [#allocation4], %s245
          %s247 = smul.u32 2, %s20
          %s248 = smul.u32 3, %s22
          %s249 = smul.addr %s247, 6
          %s250 = sadd.s32 %s248, %s249
          %s251 = smul.addr %s250, 4
          %s252 = scalar_lea.vmem %s1, %s251
          // Predicated region
          $region51: #{bert_pn_forward_linear.1} parent=49 // pred_check
            _
          $region52: #{bert_pn_forward_linear.1} parent=49 // pred_check_branch
            %254 = sbr.rel (0) target = $region54
          $region53: #{bert_pn_forward_linear.1} parent=49 // pred_region
            // Predicated region
            $region55: #{bert_pn_forward_linear.1} parent=53 // pred_check
              _
            $region56: #{bert_pn_forward_linear.1} parent=53 // pred_check_branch
              %256 = sbr.rel (0) target = $region58
            $region57: #{bert_pn_forward_linear.1} parent=53 // pred_region
              %s257 = scalar_lea.vmem %s252, 8
              %s258 = scalar_lea.vmem %s246, 8 [#allocation4]
              loop: start=0, step=1, limit=1
              $region59: #{bert_pn_forward_linear.1} parent=57 // loop_pre_header
                _
              $region60: #{bert_pn_forward_linear.1} parent=57 // loop_header
                %s260 = sphi 0, %s264
                %p261 = scmp.ge.s32.totalorder %s260, 1
                %s265 = sphi %s252, %s252
                %s266 = sphi %s246, %s246
              $region61: #{bert_pn_forward_linear.1} parent=57 // loop_header_branch
                %263 = sbr.rel (%p261) target = $region65
              $region62: #{bert_pn_forward_linear.1} parent=57 // loop_body
                %v267 = vld [vmem:[%s265] sm:$0xff]
                %268 = vst [vmem:[%s266] sm:$0xff] %v267
                %v269 = vld [vmem:[%s265 + $0x18] sm:$0xff]
                %270 = vst [vmem:[%s266 + $0xc] sm:$0xff] %v269
              $region63: #{bert_pn_forward_linear.1} parent=57 // loop_footer
                %s264 = sadd.s32 1, %s260
              $region64: #{bert_pn_forward_linear.1} parent=57 // loop_footer_branch
                %259 = sbr.rel target = $region60
              $region65: #{bert_pn_forward_linear.1} parent=57 // loop_exit
                _
              loop: start=0, step=1, limit=1
              $region66: #{bert_pn_forward_linear.1} parent=57 // loop_pre_header
                _
              $region67: #{bert_pn_forward_linear.1} parent=57 // loop_header
                %s273 = sphi 0, %s277
                %p274 = scmp.ge.s32.totalorder %s273, 1
                %s278 = sphi %s257, %s257
                %s279 = sphi %s258, %s258
              $region68: #{bert_pn_forward_linear.1} parent=57 // loop_header_branch
                %276 = sbr.rel (%p274) target = $region72
              $region69: #{bert_pn_forward_linear.1} parent=57 // loop_body
                %v280 = vld [vmem:[%s278] sm:$0xf]
                %281 = vst [vmem:[%s279] sm:$0xf] %v280
                %v282 = vld [vmem:[%s278 + $0x18] sm:$0xf]
                %283 = vst [vmem:[%s279 + $0xc] sm:$0xf] %v282
              $region70: #{bert_pn_forward_linear.1} parent=57 // loop_footer
                %s277 = sadd.s32 1, %s273
              $region71: #{bert_pn_forward_linear.1} parent=57 // loop_footer_branch
                %272 = sbr.rel target = $region67
              $region72: #{bert_pn_forward_linear.1} parent=57 // loop_exit
                _
            $region58: #{bert_pn_forward_linear.1} parent=53 // pred_fallthru
              _
          $region54: #{bert_pn_forward_linear.1} parent=49 // pred_fallthru
            _
          %284 = vnop
        $region50: #{bert_pn_forward_linear.1} parent=19 // pred_fallthru
          _
        // Predicated region
        $region73: #{bert_pn_forward_linear.1} parent=19 // pred_check
          %p285 = pneg %p110
        $region74: #{bert_pn_forward_linear.1} parent=19 // pred_check_branch
          %287 = sbr.rel (%p285) target = $region76
        $region75: #{bert_pn_forward_linear.1} parent=19 // pred_region
          %s288 = sand.u32 %s100, 1
          %s289 = scalar_lea.sflag [#allocation6], %s288
          %s290 = sand.u32 %s100, 1
          %s291 = smul.addr %s290, 192
          %s292 = scalar_lea.vmem [#allocation5], %s291
          %s293 = smul.u32 48, %s22
          %s295 = ssub.s32 3072, 3072
          %296 = vsyncadd %s289, %s295
          %s297 = sadd.s32 %s21, %s293
          %s298 = smul.addr %s297, 64
          %s299 = scalar_lea.hbm %s2, %s298
          %s300 = sshll.u32 %s292, 4
          %s301 = int_to_ptr.vmem [resolvable:$true] %s300
          %306 = dma.hbm_to_vmem [thread:$0]  %s299, 3072, %s301, %s289, 64, 64, 4
        $region76: #{bert_pn_forward_linear.1} parent=19 // pred_fallthru
          _
      $region20: #{bert_pn_forward_linear.1} parent=5 // pred_fallthru
        _
      %p307 = scmp.le.s32.totalorder 1, %s13
      %p308 = scmp.lt.s32.totalorder %s13, 3
      %p309 = pnand %p307, %p308
      %p310 = pneg %p309
      // Predicated region
      $region77: #{bert_pn_forward_linear.1} parent=5 // pred_check
        _
      $region78: #{bert_pn_forward_linear.1} parent=5 // pred_check_branch
        %312 = sbr.rel (%p309) target = $region80
      $region79: #{bert_pn_forward_linear.1} parent=5 // pred_region
        %s313 = ssub.s32 %s13, 1
        %s314 = sand.u32 %s47, 1
        %s315 = sand.u32 %s47, 1
        %s316 = smul.addr %s315, 24
        %s317 = scalar_lea.vmem [#allocation3], %s316
        // Predicated region
        $region81: #{bert_pn_forward_linear.1} parent=79 // pred_check
          %p318 = pneg %p60
        $region82: #{bert_pn_forward_linear.1} parent=79 // pred_check_branch
          %320 = sbr.rel (%p318) target = $region84
        $region83: #{bert_pn_forward_linear.1} parent=79 // pred_region
          _
        $region84: #{bert_pn_forward_linear.1} parent=79 // pred_fallthru
          _
        %s321 = sand.u32 %s75, 1
        %s322 = sand.u32 %s75, 1
        %s323 = smul.addr %s322, 24
        %s324 = scalar_lea.vmem [#allocation4], %s323
        // Predicated region
        $region85: #{bert_pn_forward_linear.1} parent=79 // pred_check
          %p325 = pneg %p88
        $region86: #{bert_pn_forward_linear.1} parent=79 // pred_check_branch
          %327 = sbr.rel (%p325) target = $region88
        $region87: #{bert_pn_forward_linear.1} parent=79 // pred_region
          _
        $region88: #{bert_pn_forward_linear.1} parent=79 // pred_fallthru
          _
        %s328 = sand.u32 %s103, 1
        %s329 = scalar_lea.sflag [#allocation6], %s328
        %s330 = sand.u32 %s103, 1
        %s331 = smul.addr %s330, 192
        %s332 = scalar_lea.vmem [#allocation5], %s331
        // Predicated region
        $region89: #{bert_pn_forward_linear.1} parent=79 // pred_check
          %p333 = pneg %p116
        $region90: #{bert_pn_forward_linear.1} parent=79 // pred_check_branch
          %335 = sbr.rel (%p333) target = $region92
        $region91: #{bert_pn_forward_linear.1} parent=79 // pred_region
          %336 = dma.done %s329, 3072
        $region92: #{bert_pn_forward_linear.1} parent=79 // pred_fallthru
          _
        %s337 = sand.u32 %s47, 1
        %s338 = sand.u32 %s47, 1
        %s339 = smul.addr %s338, 24
        %s340 = scalar_lea.vmem [#allocation3], %s339
        %p341 = pneg %p60
        %p342 = pneg %p57
        %s343 = sand.u32 %s75, 1
        %s344 = sand.u32 %s75, 1
        %s345 = smul.addr %s344, 24
        %s346 = scalar_lea.vmem [#allocation4], %s345
        %p347 = pneg %p88
        %p348 = pneg %p85
        %s349 = sand.u32 %s103, 1
        %s350 = scalar_lea.sflag [#allocation6], %s349
        %s351 = sand.u32 %s103, 1
        %s352 = smul.addr %s351, 192
        %s353 = scalar_lea.vmem [#allocation5], %s352
        %p354 = pneg %p116
        %p355 = pneg %p113
        %p356 = scmp.lt.s32.totalorder %s24, 0
        %s357 = scalar_select %p356, %s24, 0
        %s358 = scalar_lea.vmem %s3, %s357
        %p359 = pneg %p142
        %p360 = pneg %p139
        %p361 = pneg %p170
        %p362 = pneg %p167
        %s363 = smul.u32 2, %s23
        %p364 = scmp.lt.s32.totalorder %s363, 1
        %s365 = scalar_select %p364, %s363, 1
        %p366 = scmp.lt.s32.totalorder %s24, 0
        %s367 = scalar_select %p366, %s24, 0
        %s368 = sadd.s32 %s367, %s365
        %s369 = smul.addr %s368, 8
        %s370 = scalar_lea.vmem %s4, %s369
        %s371 = smul.u32 2, %s23
        %s372 = smul.u32 3, %s25
        %s373 = smul.u32 2, %s23
        %s374 = smul.u32 3, %s25
        %s375 = smul.u32 48, %s25
        %p376 = scmp.lt.s32.totalorder %s24, 0
        %s377 = scalar_select %p376, %s24, 0
        %s378 = scalar_lea.vmem %s3, %s377
        %s379 = smul.u32 2, %s23
        %p380 = scmp.lt.s32.totalorder %s379, 1
        %s381 = scalar_select %p380, %s379, 1
        %p382 = scmp.lt.s32.totalorder %s24, 0
        %s383 = scalar_select %p382, %s24, 0
        %s384 = sadd.s32 %s383, %s381
        %s385 = smul.addr %s384, 8
        %s386 = scalar_lea.vmem %s4, %s385
        %s387 = smul.u32 2, %s23
        %p389 = scmp.eq.s32.totalorder %s25, 0
        // Predicated region
        $region93: #{bert_pn_forward_linear.1} parent=79 // pred_check
          %p390 = pneg %p389
        $region94: #{bert_pn_forward_linear.1} parent=79 // pred_check_branch
          %392 = sbr.rel (%p390) target = $region96
        $region95: #{bert_pn_forward_linear.1} parent=79 // pred_region
          %393 = vst [vmem:[#allocation2] sm:$0xff] 0.0
          %394 = vst [vmem:[#allocation2 + $0x8] sm:$0xff] 0.0
        $region96: #{bert_pn_forward_linear.1} parent=79 // pred_fallthru
          _
        %v395 = vld [vmem:[%s317] sm:$0xff]
        %v396 = vld [vmem:[%s317 + $0x8] sm:$0xf]
        %v397 = vld [vmem:[%s317 + $0xc] sm:$0xff]
        %v398 = vld [vmem:[%s317 + $0x14] sm:$0xf]
        %v399 = vld [vmem:[%s324] sm:$0xff]
        %v400 = vld [vmem:[%s324 + $0x8] sm:$0xf]
        %v401 = vld [vmem:[%s324 + $0xc] sm:$0xff]
        %v402 = vld [vmem:[%s324 + $0x14] sm:$0xf]
        %v403 = vmul.bf16 %v395, %v399
        %v404 = vmul.bf16 %v396, %v400
        %v405 = vmul.bf16 %v397, %v401
        %v406 = vmul.bf16 %v398, %v402
        %v407 = vld [vmem:[#allocation2] sm:$0xff]
        %v408 = vld [vmem:[#allocation2 + $0x8] sm:$0xff]
        %v409 = vld [vmem:[%s332] sm:$0xf]
        %v410 = vld [vmem:[%s332 + $0x4] sm:$0xf]
        %v411 = vld [vmem:[%s332 + $0x8] sm:$0xf]
        %v412 = vld [vmem:[%s332 + $0xc] sm:$0xf]
        %v413 = vld [vmem:[%s332 + $0x10] sm:$0xf]
        %v414 = vld [vmem:[%s332 + $0x14] sm:$0xf]
        %v415 = vld [vmem:[%s332 + $0x18] sm:$0xf]
        %v416 = vld [vmem:[%s332 + $0x1c] sm:$0xf]
        %v417 = vld [vmem:[%s332 + $0x20] sm:$0xf]
        %v418 = vld [vmem:[%s332 + $0x24] sm:$0xf]
        %v419 = vld [vmem:[%s332 + $0x28] sm:$0xf]
        %v420 = vld [vmem:[%s332 + $0x2c] sm:$0xf]
        %v421 = vld [vmem:[%s332 + $0x30] sm:$0xf]
        %v422 = vld [vmem:[%s332 + $0x34] sm:$0xf]
        %v423 = vld [vmem:[%s332 + $0x38] sm:$0xf]
        %v424 = vld [vmem:[%s332 + $0x3c] sm:$0xf]
        %v425 = vld [vmem:[%s332 + $0x40] sm:$0xf]
        %v426 = vld [vmem:[%s332 + $0x44] sm:$0xf]
        %v427 = vld [vmem:[%s332 + $0x48] sm:$0xf]
        %v428 = vld [vmem:[%s332 + $0x4c] sm:$0xf]
        %v429 = vld [vmem:[%s332 + $0x50] sm:$0xf]
        %v430 = vld [vmem:[%s332 + $0x54] sm:$0xf]
        %v431 = vld [vmem:[%s332 + $0x58] sm:$0xf]
        %v432 = vld [vmem:[%s332 + $0x5c] sm:$0xf]
        %v433 = vld [vmem:[%s332 + $0x60] sm:$0xf]
        %v434 = vld [vmem:[%s332 + $0x64] sm:$0xf]
        %v435 = vld [vmem:[%s332 + $0x68] sm:$0xf]
        %v436 = vld [vmem:[%s332 + $0x6c] sm:$0xf]
        %v437 = vld [vmem:[%s332 + $0x70] sm:$0xf]
        %v438 = vld [vmem:[%s332 + $0x74] sm:$0xf]
        %v439 = vld [vmem:[%s332 + $0x78] sm:$0xf]
        %v440 = vld [vmem:[%s332 + $0x7c] sm:$0xf]
        %v441 = vld [vmem:[%s332 + $0x80] sm:$0xf]
        %v442 = vld [vmem:[%s332 + $0x84] sm:$0xf]
        %v443 = vld [vmem:[%s332 + $0x88] sm:$0xf]
        %v444 = vld [vmem:[%s332 + $0x8c] sm:$0xf]
        %v445 = vld [vmem:[%s332 + $0x90] sm:$0xf]
        %v446 = vld [vmem:[%s332 + $0x94] sm:$0xf]
        %v447 = vld [vmem:[%s332 + $0x98] sm:$0xf]
        %v448 = vld [vmem:[%s332 + $0x9c] sm:$0xf]
        %v449 = vld [vmem:[%s332 + $0xa0] sm:$0xf]
        %v450 = vld [vmem:[%s332 + $0xa4] sm:$0xf]
        %v451 = vld [vmem:[%s332 + $0xa8] sm:$0xf]
        %v452 = vld [vmem:[%s332 + $0xac] sm:$0xf]
        %v453 = vld [vmem:[%s332 + $0xb0] sm:$0xf]
        %v454 = vld [vmem:[%s332 + $0xb4] sm:$0xf]
        %v455 = vld [vmem:[%s332 + $0xb8] sm:$0xf]
        %v456 = vld [vmem:[%s332 + $0xbc] sm:$0xf]
        %v461 = vunpack.c.l.b16 %v403
        %v462 = vunpack.c.h.b16 %v403
        %v463 = vunpack.c.l.b16 %v404
        %v464 = vunpack.c.l.b16 %v405
        %v465 = vunpack.c.h.b16 %v405
        %v466 = vunpack.c.l.b16 %v406
        %v467 = vpack.c.b16 %v464, %v461
        %v468 = vpack.c.b16 %v465, %v462
        %v469 = vpack.c.b16 %v466, %v463
        %v521 = vunpack.c.l.b16 %v409
        %v522 = vunpack.c.l.b16 %v410
        %v523 = vunpack.c.l.b16 %v411
        %v524 = vunpack.c.l.b16 %v412
        %v525 = vunpack.c.l.b16 %v413
        %v526 = vunpack.c.l.b16 %v414
        %v527 = vunpack.c.l.b16 %v415
        %v528 = vunpack.c.l.b16 %v416
        %v529 = vunpack.c.l.b16 %v417
        %v530 = vunpack.c.l.b16 %v418
        %v531 = vunpack.c.l.b16 %v419
        %v532 = vunpack.c.l.b16 %v420
        %v533 = vunpack.c.l.b16 %v421
        %v534 = vunpack.c.l.b16 %v422
        %v535 = vunpack.c.l.b16 %v423
        %v536 = vunpack.c.l.b16 %v424
        %v537 = vunpack.c.l.b16 %v425
        %v538 = vunpack.c.l.b16 %v426
        %v539 = vunpack.c.l.b16 %v427
        %v540 = vunpack.c.l.b16 %v428
        %v541 = vunpack.c.l.b16 %v429
        %v542 = vunpack.c.l.b16 %v430
        %v543 = vunpack.c.l.b16 %v431
        %v544 = vunpack.c.l.b16 %v432
        %v545 = vunpack.c.l.b16 %v433
        %v546 = vunpack.c.l.b16 %v434
        %v547 = vunpack.c.l.b16 %v435
        %v548 = vunpack.c.l.b16 %v436
        %v549 = vunpack.c.l.b16 %v437
        %v550 = vunpack.c.l.b16 %v438
        %v551 = vunpack.c.l.b16 %v439
        %v552 = vunpack.c.l.b16 %v440
        %v553 = vunpack.c.l.b16 %v441
        %v554 = vunpack.c.l.b16 %v442
        %v555 = vunpack.c.l.b16 %v443
        %v556 = vunpack.c.l.b16 %v444
        %v557 = vunpack.c.l.b16 %v445
        %v558 = vunpack.c.l.b16 %v446
        %v559 = vunpack.c.l.b16 %v447
        %v560 = vunpack.c.l.b16 %v448
        %v561 = vunpack.c.l.b16 %v449
        %v562 = vunpack.c.l.b16 %v450
        %v563 = vunpack.c.l.b16 %v451
        %v564 = vunpack.c.l.b16 %v452
        %v565 = vunpack.c.l.b16 %v453
        %v566 = vunpack.c.l.b16 %v454
        %v567 = vunpack.c.l.b16 %v455
        %v568 = vunpack.c.l.b16 %v456
        %v569 = vpack.c.b16 %v522, %v521
        %v570 = vpack.c.b16 %v524, %v523
        %v571 = vpack.c.b16 %v526, %v525
        %v572 = vpack.c.b16 %v528, %v527
        %v573 = vpack.c.b16 %v530, %v529
        %v574 = vpack.c.b16 %v532, %v531
        %v575 = vpack.c.b16 %v534, %v533
        %v576 = vpack.c.b16 %v536, %v535
        %v577 = vpack.c.b16 %v538, %v537
        %v578 = vpack.c.b16 %v540, %v539
        %v579 = vpack.c.b16 %v542, %v541
        %v580 = vpack.c.b16 %v544, %v543
        %v581 = vpack.c.b16 %v546, %v545
        %v582 = vpack.c.b16 %v548, %v547
        %v583 = vpack.c.b16 %v550, %v549
        %v584 = vpack.c.b16 %v552, %v551
        %v585 = vpack.c.b16 %v554, %v553
        %v586 = vpack.c.b16 %v556, %v555
        %v587 = vpack.c.b16 %v558, %v557
        %v588 = vpack.c.b16 %v560, %v559
        %v589 = vpack.c.b16 %v562, %v561
        %v590 = vpack.c.b16 %v564, %v563
        %v591 = vpack.c.b16 %v566, %v565
        %v592 = vpack.c.b16 %v568, %v567
        %617 = vmatprep.subr.bf16.mxu0 0
        %618 = vmatpush1.bf16.msra.mxu0 %v569
        %619 = vmatprep.subr.bf16.mxu0 0
        %620 = vmatpush1.bf16.msra.mxu0 %v570
        %621 = vmatprep.subr.bf16.mxu0 0
        %622 = vmatpush1.bf16.msra.mxu0 %v571
        %623 = vmatprep.subr.bf16.mxu0 0
        %624 = vmatpush1.bf16.msra.mxu0 %v572
        %625 = vmatprep.subr.bf16.mxu0 0
        %626 = vmatpush1.bf16.msra.mxu0 %v573
        %627 = vmatprep.subr.bf16.mxu0 0
        %628 = vmatpush1.bf16.msra.mxu0 %v574
        %629 = vmatprep.subr.bf16.mxu0 0
        %630 = vmatpush1.bf16.msra.mxu0 %v575
        %631 = vmatprep.subr.bf16.mxu0 0
        %632 = vmatpush1.bf16.msra.mxu0 %v576
        %633 = vmatprep.subr.bf16.mxu0 0
        %634 = vmatpush1.bf16.msra.mxu0 %v577
        %635 = vmatprep.subr.bf16.mxu0 0
        %636 = vmatpush1.bf16.msra.mxu0 %v578
        %637 = vmatprep.subr.bf16.mxu0 0
        %638 = vmatpush1.bf16.msra.mxu0 %v579
        %639 = vmatprep.subr.bf16.mxu0 0
        %640 = vmatpush1.bf16.msra.mxu0 %v580
        %641 = vmatprep.subr.bf16.mxu0 0
        %642 = vmatpush1.bf16.msra.mxu0 %v581
        %643 = vmatprep.subr.bf16.mxu0 0
        %644 = vmatpush1.bf16.msra.mxu0 %v582
        %645 = vmatprep.subr.bf16.mxu0 0
        %646 = vmatpush1.bf16.msra.mxu0 %v583
        %647 = vmatprep.subr.bf16.mxu0 0
        %648 = vmatpush1.bf16.msra.mxu0 %v584
        %649 = vmatprep.mubr.bf16.mxu0 %v468
        %650 = vmatmul.mubr.bf16.gmra.mrb[0].mxu0 %v467
        %v651 = vpop.f32.mrb[0].mxu0
        %v652 = vadd.f32 0.0, %v651
        %v653 = vpop.f32.mrb[0].mxu0
        %v654 = vpop.f32.mrb[0].mxu0
        %v655 = vadd.f32 0.0, %v654
        %v656 = vpop.f32.mrb[0].mxu0
        %657 = vdwg.mxu0
        %658 = vmatprep.subr.bf16.mxu0 0
        %659 = vmatpush1.bf16.msra.mxu0 %v585
        %660 = vmatprep.subr.bf16.mxu0 0
        %661 = vmatpush1.bf16.msra.mxu0 %v586
        %662 = vmatprep.subr.bf16.mxu0 0
        %663 = vmatpush1.bf16.msra.mxu0 %v587
        %664 = vmatprep.subr.bf16.mxu0 0
        %665 = vmatpush1.bf16.msra.mxu0 %v588
        %666 = vmatprep.subr.bf16.mxu0 0
        %667 = vmatpush1.bf16.msra.mxu0 %v589
        %668 = vmatprep.subr.bf16.mxu0 0
        %669 = vmatpush1.bf16.msra.mxu0 %v590
        %670 = vmatprep.subr.bf16.mxu0 0
        %671 = vmatpush1.bf16.msra.mxu0 %v591
        %672 = vmatprep.subr.bf16.mxu0 0
        %673 = vmatpush1.bf16.msra.mxu0 %v592
        %674 = vmatprep.subr.bf16.mxu0 0
        %675 = vmatpush1.bf16.msra.mxu0 0
        %676 = vmatprep.subr.bf16.mxu0 0
        %677 = vmatpush1.bf16.msra.mxu0 0
        %678 = vmatprep.subr.bf16.mxu0 0
        %679 = vmatpush1.bf16.msra.mxu0 0
        %680 = vmatprep.subr.bf16.mxu0 0
        %681 = vmatpush1.bf16.msra.mxu0 0
        %682 = vmatprep.subr.bf16.mxu0 0
        %683 = vmatpush1.bf16.msra.mxu0 0
        %684 = vmatprep.subr.bf16.mxu0 0
        %685 = vmatpush1.bf16.msra.mxu0 0
        %686 = vmatprep.subr.bf16.mxu0 0
        %687 = vmatpush1.bf16.msra.mxu0 0
        %688 = vmatprep.subr.bf16.mxu0 0
        %689 = vmatpush1.bf16.msra.mxu0 0
        %690 = vmatprep.mubr.bf16.mxu0 0
        %691 = vmatmul.mubr.bf16.gmra.mrb[0].mxu0 %v469
        %v692 = vpop.f32.mrb[0].mxu0
        %v693 = vadd.f32 %v652, %v692
        %v694 = vpop.f32.mrb[0].mxu0
        %v695 = vpop.f32.mrb[0].mxu0
        %v696 = vadd.f32 %v655, %v695
        %v697 = vpop.f32.mrb[0].mxu0
        %698 = vdwg.mxu0
        %v699 = vadd.f32 %v407, %v693
        %v700 = vadd.f32 %v408, %v696
        %701 = vst [vmem:[#allocation2] sm:$0xff] %v699
        %702 = vst [vmem:[#allocation2 + $0x8] sm:$0xff] %v700
        %p703 = scmp.eq.s32.totalorder %s25, 1
        // Predicated region
        $region97: #{bert_pn_forward_linear.1} parent=79 // pred_check
          %p704 = pneg %p703
        $region98: #{bert_pn_forward_linear.1} parent=79 // pred_check_branch
          %706 = sbr.rel (%p704) target = $region100
        $region99: #{bert_pn_forward_linear.1} parent=79 // pred_region
          %v707 = vld [vmem:[#allocation2] sm:$0xff]
          %v708 = vld [vmem:[#allocation2 + $0x8] sm:$0xff]
          %v709 = vld [vmem:[%s378] sm:$0x1]
          %v711 = vlaneseq
          %v712 = vshrl.u32 %v711, 7
          %v713 = vsub.s32 0, %v712
          %v714 = vrot.slane %v709, %v713
          %v716 = vadd.f32 %v707, %v714
          %v717 = vadd.f32 %v708, %v714
          %718 = vst [vmem:[%s386] sm:$0xff] %v716
          %719 = vst [vmem:[%s386 + $0x8] sm:$0xff] %v717
        $region100: #{bert_pn_forward_linear.1} parent=79 // pred_fallthru
          _
        %s720 = smul.u32 2, %s23
        %p721 = scmp.lt.s32.totalorder %s720, 1
        %s722 = scalar_select %p721, %s720, 1
        %p723 = scmp.lt.s32.totalorder %s24, 0
        %s724 = scalar_select %p723, %s24, 0
        %s725 = sadd.s32 %s724, %s722
        %s726 = smul.addr %s725, 8
        %s727 = scalar_lea.vmem %s4, %s726
        // Predicated region
        $region101: #{bert_pn_forward_linear.1} parent=79 // pred_check
          %p728 = pneg %p167
        $region102: #{bert_pn_forward_linear.1} parent=79 // pred_check_branch
          %730 = sbr.rel (%p728) target = $region104
        $region103: #{bert_pn_forward_linear.1} parent=79 // pred_region
          %s731 = smul.u32 2, %s23
        $region104: #{bert_pn_forward_linear.1} parent=79 // pred_fallthru
          _
        // Predicated region
        $region105: #{bert_pn_forward_linear.1} parent=79 // pred_check
          %p732 = pneg %p167
        $region106: #{bert_pn_forward_linear.1} parent=79 // pred_check_branch
          %734 = sbr.rel (%p732) target = $region108
        $region107: #{bert_pn_forward_linear.1} parent=79 // pred_region
          %s735 = smul.u32 2, %s23
          %p736 = scmp.lt.s32.totalorder %s735, 1
          %s737 = scalar_select %p736, %s735, 1
          %p738 = scmp.lt.s32.totalorder %s24, 0
          %s739 = scalar_select %p738, %s24, 0
          %s740 = sadd.s32 %s739, %s737
          %s741 = smul.addr %s740, 8
          %s742 = scalar_lea.vmem %s4, %s741
        $region108: #{bert_pn_forward_linear.1} parent=79 // pred_fallthru
          _
      $region80: #{bert_pn_forward_linear.1} parent=5 // pred_fallthru
        _
      %p743 = scmp.le.s32.totalorder 2, %s13
      // Predicated region
      $region109: #{bert_pn_forward_linear.1} parent=5 // pred_check
        %p744 = pneg %p743
      $region110: #{bert_pn_forward_linear.1} parent=5 // pred_check_branch
        %746 = sbr.rel (%p744) target = $region112
      $region111: #{bert_pn_forward_linear.1} parent=5 // pred_region
        %s747 = ssub.s32 %s13, 2
      $region112: #{bert_pn_forward_linear.1} parent=5 // pred_fallthru
        _
    $region6: #{bert_pn_forward_linear.1} parent=1 // loop_footer
      %s17 = sadd.s32 1, %s13
    $region7: #{bert_pn_forward_linear.1} parent=1 // loop_footer_branch
      %12 = sbr.rel target = $region3
    $region8: #{bert_pn_forward_linear.1} parent=1 // loop_exit
      _
    %748 = vsyncpa [#allocation6], 1
    %s749 = scalar_lea.sflag [#allocation6], 1
    %750 = vsyncpa %s749, 1

</llo_original>
